<compile_context>
chip_gen: v5e
topology: v5e:2x2
jax: 0.10.0
libtpu: 0.0.40
codegen_flags: <defaults>
</compile_context>

<pallas_src>
import functools

import jax
import jax.numpy as jnp
from jax import lax
from jax.experimental import pallas as pl
from jax.experimental.pallas import tpu as pltpu


def _wd_lstm_recurrent_kernel(pg_ref, whh_ref, h0_ref, c0_ref,
                              out_ref, hn_ref, cn_ref,
                              h_s, c_s,
                              *, hidden, t_chunk):
    """Recurrent part of the LSTM over one chunk of time steps.

    pg_ref : (T_c, B, 4H)  precomputed x_t @ W_ih^T + (b_ih + b_hh)
    whh_ref: (H, 4H)       dropped recurrent weight, already transposed
    out_ref: (T_c, B, H)   hidden-state outputs for this chunk
    h_s,c_s: (B, H) f32    carried recurrent state (scratch, persists across grid steps)
    """
    tc = pl.program_id(0)
    H = hidden

    # Initialize the carried state on the first chunk only.
    @pl.when(tc == 0)
    def _():
        h_s[...] = h0_ref[...].astype(jnp.float32)
        c_s[...] = c0_ref[...].astype(jnp.float32)

    # Load the (H, 4H) recurrent weight once per chunk (reused across the unrolled steps).
    whh = whh_ref[...]

    def step(t, carry):
        h, c = carry
        gates = pg_ref[t] + jnp.dot(h, whh, preferred_element_type=jnp.float32)  # (B, 4H)
        # Gate slices start on 128-lane boundaries when H % 128 == 0 (zero-cost views).
        i_g = jax.nn.sigmoid(gates[:, 0 * H:1 * H])
        f_g = jax.nn.sigmoid(gates[:, 1 * H:2 * H])
        g_g = jnp.tanh(gates[:, 2 * H:3 * H])
        o_g = jax.nn.sigmoid(gates[:, 3 * H:4 * H])
        c_new = f_g * c + i_g * g_g
        h_new = o_g * jnp.tanh(c_new)
        out_ref[t] = h_new.astype(out_ref.dtype)
        return (h_new, c_new)

    h_fin, c_fin = lax.fori_loop(0, t_chunk, step, (h_s[...], c_s[...]), unroll=True)

    # Persist the carry for the next chunk.
    h_s[...] = h_fin
    c_s[...] = c_fin

    # Final-state outputs are only meaningful at the end: write them once.
    @pl.when(tc == pl.num_programs(0) - 1)
    def _():
        hn_ref[...] = h_fin.astype(hn_ref.dtype)
        cn_ref[...] = c_fin.astype(cn_ref.dtype)


def weight_drop_lstm(x, h0, c0, w_ih, w_hh_raw, b_ih, b_hh, drop_mask, dropout,
                     *, t_chunk=4):
    """WeightDrop(LSTM) forward.

    x: (S, B, I) time-major input.  Weights have PyTorch nn.LSTM layout:
    w_ih (4H, I), w_hh_raw (4H, H), b_ih/b_hh (4H,).  drop_mask is the Bernoulli
    keep-mask for w_hh (training=True, non-variational).
    Returns (out (S, B, H), h_n (B, H), c_n (B, H)).
    """
    S, B, I = x.shape
    H4 = w_ih.shape[0]
    H = H4 // 4
    assert S % t_chunk == 0, "sequence length must be divisible by t_chunk"
    n_chunks = S // t_chunk

    # --- WeightDrop (_setweights) done once in the wrapper: one XLA elementwise op. ---
    scale = 1.0 if dropout == 0.0 else 1.0 / (1.0 - dropout)
    w_hh_t = (w_hh_raw * drop_mask * jnp.float32(scale)).T  # (H, 4H), pre-transposed

    # --- Hoisted input projection + fused bias: one dense MXU matmul outside the kernel. ---
    bias = (b_ih + b_hh).reshape(1, H4)
    pre_gates = (x.reshape(S * B, I) @ w_ih.T + bias).reshape(S, B, H4).astype(jnp.float32)

    kernel = functools.partial(_wd_lstm_recurrent_kernel, hidden=H, t_chunk=t_chunk)

    bytes_f32 = 4
    cost = pl.CostEstimate(
        flops=2 * S * B * H * H4,                 # recurrent matmuls
        transcendentals=5 * S * B * H,            # 3 sigmoids + 2 tanhs per step
        bytes_accessed=bytes_f32 * (S * B * H4 + H * H4 + S * B * H + 4 * B * H),
    )

    out, hn, cn = pl.pallas_call(
        kernel,
        out_shape=(
            jax.ShapeDtypeStruct((S, B, H), x.dtype),
            jax.ShapeDtypeStruct((B, H), x.dtype),
            jax.ShapeDtypeStruct((B, H), x.dtype),
        ),
        grid_spec=pltpu.PrefetchScalarGridSpec(
            num_scalar_prefetch=0,
            grid=(n_chunks,),
            in_specs=[
                pl.BlockSpec((t_chunk, B, H4), lambda c: (c, 0, 0)),  # pre-gates chunk
                pl.BlockSpec((H, H4), lambda c: (0, 0)),              # dropped W_hh^T
                pl.BlockSpec((B, H), lambda c: (0, 0)),               # h0
                pl.BlockSpec((B, H), lambda c: (0, 0)),               # c0
            ],
            out_specs=[
                pl.BlockSpec((t_chunk, B, H), lambda c: (c, 0, 0)),   # output sequence chunk
                pl.BlockSpec((B, H), lambda c: (0, 0)),               # h_n
                pl.BlockSpec((B, H), lambda c: (0, 0)),               # c_n
            ],
            scratch_shapes=[
                pltpu.VMEM((B, H), jnp.float32),   # carried h
                pltpu.VMEM((B, H), jnp.float32),   # carried c
            ],
        ),
        compiler_params=pltpu.CompilerParams(
            dimension_semantics=("arbitrary",),    # serial recurrence over time chunks
            vmem_limit_bytes=32 * 1024 * 1024,
        ),
        cost_estimate=cost,
    )(pre_gates, w_hh_t, h0, c0)
    return out, hn, cn


def _reference(x, h0, c0, w_ih, w_hh_raw, b_ih, b_hh, drop_mask, dropout):
    scale = 1.0 if dropout == 0.0 else 1.0 / (1.0 - dropout)
    w_hh = w_hh_raw * drop_mask * scale
    S, B, I = x.shape
    H = w_hh.shape[1]
    h, c = h0, c0
    outs = []
    for t in range(S):
        g = x[t] @ w_ih.T + b_ih + h @ w_hh.T + b_hh
        i = jax.nn.sigmoid(g[:, 0 * H:1 * H])
        f = jax.nn.sigmoid(g[:, 1 * H:2 * H])
        gg = jnp.tanh(g[:, 2 * H:3 * H])
        o = jax.nn.sigmoid(g[:, 3 * H:4 * H])
        c = f * c + i * gg
        h = o * jnp.tanh(c)
        outs.append(h)
    return jnp.stack(outs), h, c


if __name__ == "__main__":
    key = jax.random.PRNGKey(0)
    # Small but lane-aligned shapes: seq, batch, input_size, hidden_size.
    S, B, I, H = 8, 8, 128, 128
    dropout = 0.2

    ks = jax.random.split(key, 8)
    x = jax.random.normal(ks[0], (S, B, I), jnp.float32)
    h0 = jax.random.normal(ks[1], (B, H), jnp.float32)
    c0 = jax.random.normal(ks[2], (B, H), jnp.float32)
    # Deterministic "parameters" (PyTorch nn.LSTM layout: weight_ih_l0, weight_hh_l0, biases).
    w_ih = 0.1 * jax.random.normal(ks[3], (4 * H, I), jnp.float32)
    w_hh_raw = 0.1 * jax.random.normal(ks[4], (4 * H, H), jnp.float32)
    b_ih = 0.1 * jax.random.normal(ks[5], (4 * H,), jnp.float32)
    b_hh = 0.1 * jax.random.normal(ks[6], (4 * H,), jnp.float32)
    # Weight-drop Bernoulli keep-mask (training=True, non-variational).
    # TODO(synk): torch's RNG stream has no JAX equivalent; mask is generated with jax.random.
    drop_mask = jax.random.bernoulli(ks[7], 1.0 - dropout, (4 * H, H)).astype(jnp.float32)

    out, hn, cn = weight_drop_lstm(x, h0, c0, w_ih, w_hh_raw, b_ih, b_hh,
                                   drop_mask, dropout, t_chunk=4)
    jax.block_until_ready((out, hn, cn))

    ref_out, ref_hn, ref_cn = _reference(x, h0, c0, w_ih, w_hh_raw, b_ih, b_hh,
                                         drop_mask, dropout)
    assert jnp.allclose(out, ref_out, atol=1e-4, rtol=1e-4)
    assert jnp.allclose(hn, ref_hn, atol=1e-4, rtol=1e-4)
    assert jnp.allclose(cn, ref_cn, atol=1e-4, rtol=1e-4)

    print("KERNEL_OK")
</pallas_src>

<mosaic_0001>
module attributes {stable_mosaic.version = 11 : i64} {
  func.func @_wd_lstm_recurrent_kernel(%arg0: i32, %arg1: memref<4x8x512xf32, #tpu.memory_space<vmem>>, %arg2: memref<128x512xf32, #tpu.memory_space<vmem>>, %arg3: memref<8x128xf32, #tpu.memory_space<vmem>>, %arg4: memref<8x128xf32, #tpu.memory_space<vmem>>, %arg5: memref<4x8x128xf32, #tpu.memory_space<vmem>>, %arg6: memref<8x128xf32, #tpu.memory_space<vmem>>, %arg7: memref<8x128xf32, #tpu.memory_space<vmem>>, %arg8: memref<8x128xf32, #tpu.memory_space<vmem>>, %arg9: memref<8x128xf32, #tpu.memory_space<vmem>>) attributes {dimension_semantics = [#tpu.dimension_semantics<arbitrary>], iteration_bounds = array<i64: 2>, scalar_prefetch = 0 : i64, scratch_operands = 2 : i64, tpu.core_type = #tpu.core_type<tc>, window_params = [{transform_indices = @transform_0, window_bounds = array<i64: 4, 8, 512>}, {pipeline_mode = #tpu.pipeline_mode<synchronous>, transform_indices = @transform_1, window_bounds = array<i64: 128, 512>}, {pipeline_mode = #tpu.pipeline_mode<synchronous>, transform_indices = @transform_2, window_bounds = array<i64: 8, 128>}, {pipeline_mode = #tpu.pipeline_mode<synchronous>, transform_indices = @transform_3, window_bounds = array<i64: 8, 128>}, {transform_indices = @transform_4, window_bounds = array<i64: 4, 8, 128>}, {pipeline_mode = #tpu.pipeline_mode<synchronous>, transform_indices = @transform_5, window_bounds = array<i64: 8, 128>}, {pipeline_mode = #tpu.pipeline_mode<synchronous>, transform_indices = @transform_6, window_bounds = array<i64: 8, 128>}]} {
    %c0_i32 = arith.constant 0 : i32
    %0 = arith.cmpi eq, %arg0, %c0_i32 : i32
    %1 = arith.extui %0 : i1 to i32
    %c0_i32_0 = arith.constant 0 : i32
    %2 = arith.cmpi ne, %1, %c0_i32_0 : i32
    scf.if %2 {
      %c0_44 = arith.constant 0 : index
      %c0_45 = arith.constant 0 : index
      %147 = vector.load %arg3[%c0_44, %c0_45] : memref<8x128xf32, #tpu.memory_space<vmem>>, vector<8x128xf32>
      %c0_46 = arith.constant 0 : index
      %c0_47 = arith.constant 0 : index
      %148 = vector.load %arg8[%c0_46, %c0_47] : memref<8x128xf32, #tpu.memory_space<vmem>>, vector<8x128xf32>
      tpu.vector_store %arg8[%c0_46, %c0_47], %147 {strides = array<i32>} : memref<8x128xf32, #tpu.memory_space<vmem>>, vector<8x128xf32>,
      %c0_48 = arith.constant 0 : index
      %c0_49 = arith.constant 0 : index
      %149 = vector.load %arg4[%c0_48, %c0_49] : memref<8x128xf32, #tpu.memory_space<vmem>>, vector<8x128xf32>
      %c0_50 = arith.constant 0 : index
      %c0_51 = arith.constant 0 : index
      %150 = vector.load %arg9[%c0_50, %c0_51] : memref<8x128xf32, #tpu.memory_space<vmem>>, vector<8x128xf32>
      tpu.vector_store %arg9[%c0_50, %c0_51], %149 {strides = array<i32>} : memref<8x128xf32, #tpu.memory_space<vmem>>, vector<8x128xf32>,
    } else {
    }
    %c0 = arith.constant 0 : index
    %c0_1 = arith.constant 0 : index
    %3 = vector.load %arg2[%c0, %c0_1] : memref<128x512xf32, #tpu.memory_space<vmem>>, vector<128x512xf32>
    %c0_2 = arith.constant 0 : index
    %c0_3 = arith.constant 0 : index
    %4 = vector.load %arg8[%c0_2, %c0_3] : memref<8x128xf32, #tpu.memory_space<vmem>>, vector<8x128xf32>
    %c0_4 = arith.constant 0 : index
    %c0_5 = arith.constant 0 : index
    %5 = vector.load %arg9[%c0_4, %c0_5] : memref<8x128xf32, #tpu.memory_space<vmem>>, vector<8x128xf32>
    %c0_i32_6 = arith.constant 0 : i32
    %6 = arith.index_cast %c0_i32_6 : i32 to index
    %c0_7 = arith.constant 0 : index
    %c0_8 = arith.constant 0 : index
    %7 = vector.load %arg1[%6, %c0_7, %c0_8] : memref<4x8x512xf32, #tpu.memory_space<vmem>>, vector<1x8x512xf32>
    %8 = vector.shape_cast %7 : vector<1x8x512xf32> to vector<8x512xf32>
    %cst = arith.constant dense<0.000000e+00> : vector<8x512xf32>
    %9 = tpu.matmul %4, %3, %cst {dimension_numbers = #tpu.dot_dimension_numbers<[1], [0], [0], [1], [0, 0, 1, 1], [], []>} : vector<8x128xf32>, vector<128x512xf32>, vector<8x512xf32> -> vector<8x512xf32>
    %10 = arith.addf %8, %9 : vector<8x512xf32>
    %11 = vector.extract_strided_slice %10 {offsets = [0, 0], sizes = [8, 128], strides = [1, 1]} : vector<8x512xf32> to vector<8x128xf32>
    %12 = arith.negf %11 : vector<8x128xf32>
    %13 = math.exp %12 : vector<8x128xf32>
    %cst_9 = arith.constant 1.000000e+00 : f32
    %14 = vector.broadcast %cst_9 : f32 to vector<8x128xf32>
    %15 = arith.addf %14, %13 : vector<8x128xf32>
    %16 = arith.divf %14, %15 : vector<8x128xf32>
    %17 = vector.extract_strided_slice %10 {offsets = [0, 128], sizes = [8, 128], strides = [1, 1]} : vector<8x512xf32> to vector<8x128xf32>
    %18 = arith.negf %17 : vector<8x128xf32>
    %19 = math.exp %18 : vector<8x128xf32>
    %cst_10 = arith.constant 1.000000e+00 : f32
    %20 = vector.broadcast %cst_10 : f32 to vector<8x128xf32>
    %21 = arith.addf %20, %19 : vector<8x128xf32>
    %22 = arith.divf %20, %21 : vector<8x128xf32>
    %23 = vector.extract_strided_slice %10 {offsets = [0, 256], sizes = [8, 128], strides = [1, 1]} : vector<8x512xf32> to vector<8x128xf32>
    %24 = math.tanh %23 : vector<8x128xf32>
    %25 = vector.extract_strided_slice %10 {offsets = [0, 384], sizes = [8, 128], strides = [1, 1]} : vector<8x512xf32> to vector<8x128xf32>
    %26 = arith.negf %25 : vector<8x128xf32>
    %27 = math.exp %26 : vector<8x128xf32>
    %cst_11 = arith.constant 1.000000e+00 : f32
    %28 = vector.broadcast %cst_11 : f32 to vector<8x128xf32>
    %29 = arith.addf %28, %27 : vector<8x128xf32>
    %30 = arith.divf %28, %29 : vector<8x128xf32>
    %31 = arith.mulf %22, %5 : vector<8x128xf32>
    %32 = arith.mulf %16, %24 : vector<8x128xf32>
    %33 = arith.addf %31, %32 : vector<8x128xf32>
    %34 = math.tanh %33 : vector<8x128xf32>
    %35 = arith.mulf %30, %34 : vector<8x128xf32>
    %36 = arith.index_cast %c0_i32_6 : i32 to index
    %c0_12 = arith.constant 0 : index
    %c0_13 = arith.constant 0 : index
    %37 = vector.load %arg5[%36, %c0_12, %c0_13] : memref<4x8x128xf32, #tpu.memory_space<vmem>>, vector<1x8x128xf32>
    %38 = vector.shape_cast %37 : vector<1x8x128xf32> to vector<8x128xf32>
    %39 = vector.shape_cast %35 : vector<8x128xf32> to vector<1x8x128xf32>
    tpu.vector_store %arg5[%36, %c0_12, %c0_13], %39 {strides = array<i32>} : memref<4x8x128xf32, #tpu.memory_space<vmem>>, vector<1x8x128xf32>,
    %c1_i32 = arith.constant 1 : i32
    %40 = arith.index_cast %c1_i32 : i32 to index
    %c0_14 = arith.constant 0 : index
    %c0_15 = arith.constant 0 : index
    %41 = vector.load %arg1[%40, %c0_14, %c0_15] : memref<4x8x512xf32, #tpu.memory_space<vmem>>, vector<1x8x512xf32>
    %42 = vector.shape_cast %41 : vector<1x8x512xf32> to vector<8x512xf32>
    %cst_16 = arith.constant dense<0.000000e+00> : vector<8x512xf32>
    %43 = tpu.matmul %35, %3, %cst_16 {dimension_numbers = #tpu.dot_dimension_numbers<[1], [0], [0], [1], [0, 0, 1, 1], [], []>} : vector<8x128xf32>, vector<128x512xf32>, vector<8x512xf32> -> vector<8x512xf32>
    %44 = arith.addf %42, %43 : vector<8x512xf32>
    %45 = vector.extract_strided_slice %44 {offsets = [0, 0], sizes = [8, 128], strides = [1, 1]} : vector<8x512xf32> to vector<8x128xf32>
    %46 = arith.negf %45 : vector<8x128xf32>
    %47 = math.exp %46 : vector<8x128xf32>
    %cst_17 = arith.constant 1.000000e+00 : f32
    %48 = vector.broadcast %cst_17 : f32 to vector<8x128xf32>
    %49 = arith.addf %48, %47 : vector<8x128xf32>
    %50 = arith.divf %48, %49 : vector<8x128xf32>
    %51 = vector.extract_strided_slice %44 {offsets = [0, 128], sizes = [8, 128], strides = [1, 1]} : vector<8x512xf32> to vector<8x128xf32>
    %52 = arith.negf %51 : vector<8x128xf32>
    %53 = math.exp %52 : vector<8x128xf32>
    %cst_18 = arith.constant 1.000000e+00 : f32
    %54 = vector.broadcast %cst_18 : f32 to vector<8x128xf32>
    %55 = arith.addf %54, %53 : vector<8x128xf32>
    %56 = arith.divf %54, %55 : vector<8x128xf32>
    %57 = vector.extract_strided_slice %44 {offsets = [0, 256], sizes = [8, 128], strides = [1, 1]} : vector<8x512xf32> to vector<8x128xf32>
    %58 = math.tanh %57 : vector<8x128xf32>
    %59 = vector.extract_strided_slice %44 {offsets = [0, 384], sizes = [8, 128], strides = [1, 1]} : vector<8x512xf32> to vector<8x128xf32>
    %60 = arith.negf %59 : vector<8x128xf32>
    %61 = math.exp %60 : vector<8x128xf32>
    %cst_19 = arith.constant 1.000000e+00 : f32
    %62 = vector.broadcast %cst_19 : f32 to vector<8x128xf32>
    %63 = arith.addf %62, %61 : vector<8x128xf32>
    %64 = arith.divf %62, %63 : vector<8x128xf32>
    %65 = arith.mulf %56, %33 : vector<8x128xf32>
    %66 = arith.mulf %50, %58 : vector<8x128xf32>
    %67 = arith.addf %65, %66 : vector<8x128xf32>
    %68 = math.tanh %67 : vector<8x128xf32>
    %69 = arith.mulf %64, %68 : vector<8x128xf32>
    %70 = arith.index_cast %c1_i32 : i32 to index
    %c0_20 = arith.constant 0 : index
    %c0_21 = arith.constant 0 : index
    %71 = vector.load %arg5[%70, %c0_20, %c0_21] : memref<4x8x128xf32, #tpu.memory_space<vmem>>, vector<1x8x128xf32>
    %72 = vector.shape_cast %71 : vector<1x8x128xf32> to vector<8x128xf32>
    %73 = vector.shape_cast %69 : vector<8x128xf32> to vector<1x8x128xf32>
    tpu.vector_store %arg5[%70, %c0_20, %c0_21], %73 {strides = array<i32>} : memref<4x8x128xf32, #tpu.memory_space<vmem>>, vector<1x8x128xf32>,
    %c2_i32 = arith.constant 2 : i32
    %74 = arith.index_cast %c2_i32 : i32 to index
    %c0_22 = arith.constant 0 : index
    %c0_23 = arith.constant 0 : index
    %75 = vector.load %arg1[%74, %c0_22, %c0_23] : memref<4x8x512xf32, #tpu.memory_space<vmem>>, vector<1x8x512xf32>
    %76 = vector.shape_cast %75 : vector<1x8x512xf32> to vector<8x512xf32>
    %cst_24 = arith.constant dense<0.000000e+00> : vector<8x512xf32>
    %77 = tpu.matmul %69, %3, %cst_24 {dimension_numbers = #tpu.dot_dimension_numbers<[1], [0], [0], [1], [0, 0, 1, 1], [], []>} : vector<8x128xf32>, vector<128x512xf32>, vector<8x512xf32> -> vector<8x512xf32>
    %78 = arith.addf %76, %77 : vector<8x512xf32>
    %79 = vector.extract_strided_slice %78 {offsets = [0, 0], sizes = [8, 128], strides = [1, 1]} : vector<8x512xf32> to vector<8x128xf32>
    %80 = arith.negf %79 : vector<8x128xf32>
    %81 = math.exp %80 : vector<8x128xf32>
    %cst_25 = arith.constant 1.000000e+00 : f32
    %82 = vector.broadcast %cst_25 : f32 to vector<8x128xf32>
    %83 = arith.addf %82, %81 : vector<8x128xf32>
    %84 = arith.divf %82, %83 : vector<8x128xf32>
    %85 = vector.extract_strided_slice %78 {offsets = [0, 128], sizes = [8, 128], strides = [1, 1]} : vector<8x512xf32> to vector<8x128xf32>
    %86 = arith.negf %85 : vector<8x128xf32>
    %87 = math.exp %86 : vector<8x128xf32>
    %cst_26 = arith.constant 1.000000e+00 : f32
    %88 = vector.broadcast %cst_26 : f32 to vector<8x128xf32>
    %89 = arith.addf %88, %87 : vector<8x128xf32>
    %90 = arith.divf %88, %89 : vector<8x128xf32>
    %91 = vector.extract_strided_slice %78 {offsets = [0, 256], sizes = [8, 128], strides = [1, 1]} : vector<8x512xf32> to vector<8x128xf32>
    %92 = math.tanh %91 : vector<8x128xf32>
    %93 = vector.extract_strided_slice %78 {offsets = [0, 384], sizes = [8, 128], strides = [1, 1]} : vector<8x512xf32> to vector<8x128xf32>
    %94 = arith.negf %93 : vector<8x128xf32>
    %95 = math.exp %94 : vector<8x128xf32>
    %cst_27 = arith.constant 1.000000e+00 : f32
    %96 = vector.broadcast %cst_27 : f32 to vector<8x128xf32>
    %97 = arith.addf %96, %95 : vector<8x128xf32>
    %98 = arith.divf %96, %97 : vector<8x128xf32>
    %99 = arith.mulf %90, %67 : vector<8x128xf32>
    %100 = arith.mulf %84, %92 : vector<8x128xf32>
    %101 = arith.addf %99, %100 : vector<8x128xf32>
    %102 = math.tanh %101 : vector<8x128xf32>
    %103 = arith.mulf %98, %102 : vector<8x128xf32>
    %104 = arith.index_cast %c2_i32 : i32 to index
    %c0_28 = arith.constant 0 : index
    %c0_29 = arith.constant 0 : index
    %105 = vector.load %arg5[%104, %c0_28, %c0_29] : memref<4x8x128xf32, #tpu.memory_space<vmem>>, vector<1x8x128xf32>
    %106 = vector.shape_cast %105 : vector<1x8x128xf32> to vector<8x128xf32>
    %107 = vector.shape_cast %103 : vector<8x128xf32> to vector<1x8x128xf32>
    tpu.vector_store %arg5[%104, %c0_28, %c0_29], %107 {strides = array<i32>} : memref<4x8x128xf32, #tpu.memory_space<vmem>>, vector<1x8x128xf32>,
    %c3_i32 = arith.constant 3 : i32
    %108 = arith.index_cast %c3_i32 : i32 to index
    %c0_30 = arith.constant 0 : index
    %c0_31 = arith.constant 0 : index
    %109 = vector.load %arg1[%108, %c0_30, %c0_31] : memref<4x8x512xf32, #tpu.memory_space<vmem>>, vector<1x8x512xf32>
    %110 = vector.shape_cast %109 : vector<1x8x512xf32> to vector<8x512xf32>
    %cst_32 = arith.constant dense<0.000000e+00> : vector<8x512xf32>
    %111 = tpu.matmul %103, %3, %cst_32 {dimension_numbers = #tpu.dot_dimension_numbers<[1], [0], [0], [1], [0, 0, 1, 1], [], []>} : vector<8x128xf32>, vector<128x512xf32>, vector<8x512xf32> -> vector<8x512xf32>
    %112 = arith.addf %110, %111 : vector<8x512xf32>
    %113 = vector.extract_strided_slice %112 {offsets = [0, 0], sizes = [8, 128], strides = [1, 1]} : vector<8x512xf32> to vector<8x128xf32>
    %114 = arith.negf %113 : vector<8x128xf32>
    %115 = math.exp %114 : vector<8x128xf32>
    %cst_33 = arith.constant 1.000000e+00 : f32
    %116 = vector.broadcast %cst_33 : f32 to vector<8x128xf32>
    %117 = arith.addf %116, %115 : vector<8x128xf32>
    %118 = arith.divf %116, %117 : vector<8x128xf32>
    %119 = vector.extract_strided_slice %112 {offsets = [0, 128], sizes = [8, 128], strides = [1, 1]} : vector<8x512xf32> to vector<8x128xf32>
    %120 = arith.negf %119 : vector<8x128xf32>
    %121 = math.exp %120 : vector<8x128xf32>
    %cst_34 = arith.constant 1.000000e+00 : f32
    %122 = vector.broadcast %cst_34 : f32 to vector<8x128xf32>
    %123 = arith.addf %122, %121 : vector<8x128xf32>
    %124 = arith.divf %122, %123 : vector<8x128xf32>
    %125 = vector.extract_strided_slice %112 {offsets = [0, 256], sizes = [8, 128], strides = [1, 1]} : vector<8x512xf32> to vector<8x128xf32>
    %126 = math.tanh %125 : vector<8x128xf32>
    %127 = vector.extract_strided_slice %112 {offsets = [0, 384], sizes = [8, 128], strides = [1, 1]} : vector<8x512xf32> to vector<8x128xf32>
    %128 = arith.negf %127 : vector<8x128xf32>
    %129 = math.exp %128 : vector<8x128xf32>
    %cst_35 = arith.constant 1.000000e+00 : f32
    %130 = vector.broadcast %cst_35 : f32 to vector<8x128xf32>
    %131 = arith.addf %130, %129 : vector<8x128xf32>
    %132 = arith.divf %130, %131 : vector<8x128xf32>
    %133 = arith.mulf %124, %101 : vector<8x128xf32>
    %134 = arith.mulf %118, %126 : vector<8x128xf32>
    %135 = arith.addf %133, %134 : vector<8x128xf32>
    %136 = math.tanh %135 : vector<8x128xf32>
    %137 = arith.mulf %132, %136 : vector<8x128xf32>
    %138 = arith.index_cast %c3_i32 : i32 to index
    %c0_36 = arith.constant 0 : index
    %c0_37 = arith.constant 0 : index
    %139 = vector.load %arg5[%138, %c0_36, %c0_37] : memref<4x8x128xf32, #tpu.memory_space<vmem>>, vector<1x8x128xf32>
    %140 = vector.shape_cast %139 : vector<1x8x128xf32> to vector<8x128xf32>
    %141 = vector.shape_cast %137 : vector<8x128xf32> to vector<1x8x128xf32>
    tpu.vector_store %arg5[%138, %c0_36, %c0_37], %141 {strides = array<i32>} : memref<4x8x128xf32, #tpu.memory_space<vmem>>, vector<1x8x128xf32>,
    %c4_i32 = arith.constant 4 : i32
    %c0_38 = arith.constant 0 : index
    %c0_39 = arith.constant 0 : index
    %142 = vector.load %arg8[%c0_38, %c0_39] : memref<8x128xf32, #tpu.memory_space<vmem>>, vector<8x128xf32>
    tpu.vector_store %arg8[%c0_38, %c0_39], %137 {strides = array<i32>} : memref<8x128xf32, #tpu.memory_space<vmem>>, vector<8x128xf32>,
    %c0_40 = arith.constant 0 : index
    %c0_41 = arith.constant 0 : index
    %143 = vector.load %arg9[%c0_40, %c0_41] : memref<8x128xf32, #tpu.memory_space<vmem>>, vector<8x128xf32>
    tpu.vector_store %arg9[%c0_40, %c0_41], %135 {strides = array<i32>} : memref<8x128xf32, #tpu.memory_space<vmem>>, vector<8x128xf32>,
    %c1_i32_42 = arith.constant 1 : i32
    %144 = arith.cmpi eq, %arg0, %c1_i32_42 : i32
    %145 = arith.extui %144 : i1 to i32
    %c0_i32_43 = arith.constant 0 : i32
    %146 = arith.cmpi ne, %145, %c0_i32_43 : i32
    scf.if %146 {
      %c0_44 = arith.constant 0 : index
      %c0_45 = arith.constant 0 : index
      %147 = vector.load %arg6[%c0_44, %c0_45] : memref<8x128xf32, #tpu.memory_space<vmem>>, vector<8x128xf32>
      tpu.vector_store %arg6[%c0_44, %c0_45], %137 {strides = array<i32>} : memref<8x128xf32, #tpu.memory_space<vmem>>, vector<8x128xf32>,
      %c0_46 = arith.constant 0 : index
      %c0_47 = arith.constant 0 : index
      %148 = vector.load %arg7[%c0_46, %c0_47] : memref<8x128xf32, #tpu.memory_space<vmem>>, vector<8x128xf32>
      tpu.vector_store %arg7[%c0_46, %c0_47], %135 {strides = array<i32>} : memref<8x128xf32, #tpu.memory_space<vmem>>, vector<8x128xf32>,
    } else {
    }
    return
  }
  func.func @transform_0(%arg0: i32) -> (i32, i32, i32) {
    %c0_i32 = arith.constant 0 : i32
    %c0_i32_0 = arith.constant 0 : i32
    %c0_i32_1 = arith.constant 0 : i32
    return %arg0, %c0_i32, %c0_i32_0 : i32, i32, i32
  }
  func.func @transform_1(%arg0: i32) -> (i32, i32) {
    %c0_i32 = arith.constant 0 : i32
    %c0_i32_0 = arith.constant 0 : i32
    %c0_i32_1 = arith.constant 0 : i32
    return %c0_i32, %c0_i32_0 : i32, i32
  }
  func.func @transform_2(%arg0: i32) -> (i32, i32) {
    %c0_i32 = arith.constant 0 : i32
    %c0_i32_0 = arith.constant 0 : i32
    %c0_i32_1 = arith.constant 0 : i32
    return %c0_i32, %c0_i32_0 : i32, i32
  }
  func.func @transform_3(%arg0: i32) -> (i32, i32) {
    %c0_i32 = arith.constant 0 : i32
    %c0_i32_0 = arith.constant 0 : i32
    %c0_i32_1 = arith.constant 0 : i32
    return %c0_i32, %c0_i32_0 : i32, i32
  }
  func.func @transform_4(%arg0: i32) -> (i32, i32, i32) {
    %c0_i32 = arith.constant 0 : i32
    %c0_i32_0 = arith.constant 0 : i32
    %c0_i32_1 = arith.constant 0 : i32
    return %arg0, %c0_i32, %c0_i32_0 : i32, i32, i32
  }
  func.func @transform_5(%arg0: i32) -> (i32, i32) {
    %c0_i32 = arith.constant 0 : i32
    %c0_i32_0 = arith.constant 0 : i32
    %c0_i32_1 = arith.constant 0 : i32
    return %c0_i32, %c0_i32_0 : i32, i32
  }
  func.func @transform_6(%arg0: i32) -> (i32, i32) {
    %c0_i32 = arith.constant 0 : i32
    %c0_i32_0 = arith.constant 0 : i32
    %c0_i32_1 = arith.constant 0 : i32
    return %c0_i32, %c0_i32_0 : i32, i32
  }
}

</mosaic_0001>

<llo_original>
// kernel: tpu_custom_call.1
$region0: #{tpu_custom_call.1}
  #allocation0 [shape = 'u32[]', space=smem, size = 0x4, offset = 0x4, fixed_abs, tag = 'smem constant byte address 0x4 - core index']
  #allocation1 [shape = 'u32[72,128]{1,0:T(1,128)}', space=vmem, size = 0x9000, scoped, tag = 'internal scratch']
  #allocation2 [shape = 'f32[8,128]{1,0:T(8,128)}', space=vmem, size = 0x1000, scoped, tag = 'scratch operand']
  #allocation3 [shape = 'f32[8,128]{1,0:T(8,128)}', space=vmem, size = 0x1000, scoped, tag = 'scratch operand']
  %s0 = inlined_call_operand.hbm [shape: f32[8,8,512], index: 0, kind: input, shape index: {}]
  %s1 = inlined_call_operand.hbm [shape: f32[128,512], index: 1, kind: input, shape index: {}]
  %s2 = inlined_call_operand.hbm [shape: f32[8,128], index: 2, kind: input, shape index: {}]
  %s3 = inlined_call_operand.hbm [shape: f32[8,128], index: 3, kind: input, shape index: {}]
  %s4 = inlined_call_operand.hbm [shape: f32[8,8,128], index: 4, kind: output, shape index: {0}]
  %s5 = inlined_call_operand.hbm [shape: f32[8,128], index: 5, kind: output, shape index: {1}]
  %s6 = inlined_call_operand.hbm [shape: f32[8,128], index: 6, kind: output, shape index: {2}]
  %7 = xla_tuple %s4, %s5, %s6
  %s8 = sld [smem:[#allocation0]]
  $region89: #{tpu_custom_call.1} parent=0
    _
  %s10 = ssub.s32 1, %s8
  %s11 = scalar_select 0, %s10, %s8
  $region1: #{tpu_custom_call.1} parent=0
    #allocation4 [shape = 'u8[131072]{0}', space=vmem, size = 0x20000, scoped, tag = 'input window, operand 0']
    #allocation5 [shape = 's32[2]{0}', space=sflag, size = 0x8, scoped, tag = 'scoped memory for tpu_custom_call.1']
    #allocation6 [shape = 's32[2]{0}', space=sflag, size = 0x8, scoped, tag = 'scoped memory for tpu_custom_call.1']
    #allocation7 [shape = 'u8[262144]{0}', space=vmem, size = 0x40000, scoped, tag = 'input window, operand 1, single buffered']
    #allocation8 [shape = 's32[1]{0}', space=sflag, size = 0x4, scoped, tag = 'scoped memory for tpu_custom_call.1']
    #allocation9 [shape = 'u8[4096]{0}', space=vmem, size = 0x1000, scoped, tag = 'input window, operand 2, single buffered']
    #allocation10 [shape = 'u8[4096]{0}', space=vmem, size = 0x1000, scoped, tag = 'input window, operand 3, single buffered']
    #allocation11 [shape = 's32[1]{0}', space=sflag, size = 0x4, scoped, tag = 'scoped memory for tpu_custom_call.1']
    #allocation12 [shape = 'u8[32768]{0}', space=vmem, size = 0x8000, scoped, tag = 'output window, operand 0']
    #allocation13 [shape = 'u8[4096]{0}', space=vmem, size = 0x1000, scoped, tag = 'output window, operand 1, single buffered']
    #allocation14 [shape = 's32[1]{0}', space=sflag, size = 0x4, scoped, tag = 'scoped memory for tpu_custom_call.1']
    #allocation15 [shape = 'u8[4096]{0}', space=vmem, size = 0x1000, scoped, tag = 'output window, operand 2, single buffered']
    %12 = vsyncpa [#allocation5], 0
    %s13 = scalar_lea.sflag [#allocation5], 1
    %14 = vsyncpa %s13, 0
    %15 = vsyncpa [#allocation8], 0
    %16 = vsyncpa [#allocation11], 0
    %17 = vsyncpa [#allocation6], 0
    %s18 = scalar_lea.sflag [#allocation6], 1
    %19 = vsyncpa %s18, 0
    %20 = vsyncpa [#allocation14], 0
    loop: start=0, step=1, limit=4
    $region2: #{tpu_custom_call.1} parent=1 // loop_pre_header
      _
    $region3: #{tpu_custom_call.1} parent=1 // loop_header
      %s22 = sphi 0, %s26
      %p23 = scmp.ge.s32.totalorder %s22, 4
      %s32 = sphi 0, %s34
      %s35 = sphi 0, %s32
      %s36 = sphi 0, %s35
      %s52 = sphi 0, %s36
      %s56 = sphi 0, %s56
      %s58 = sphi 0, %s56
      %s59 = sphi 0, %s58
      %s73 = sphi 0, %s59
      %s77 = sphi 0, %s77
      %s79 = sphi 0, %s77
      %s80 = sphi 0, %s79
      %s94 = sphi 0, %s80
      %s98 = sphi 0, %s98
      %s100 = sphi 0, %s98
      %s101 = sphi 0, %s100
      %s115 = sphi 0, %s101
      %s121 = sphi 0, %s123
      %s124 = sphi 0, %s121
      %s125 = sphi 0, %s124
      %s141 = sphi 0, %s125
      %s145 = sphi 0, %s145
      %s147 = sphi 0, %s145
      %s148 = sphi 0, %s147
      %s162 = sphi 0, %s148
      %s166 = sphi 0, %s166
      %s168 = sphi 0, %s166
      %s169 = sphi 0, %s168
      %s183 = sphi 0, %s169
    $region4: #{tpu_custom_call.1} parent=1 // loop_header_branch
      %25 = sbr.rel (%p23) target = $region8
    $region5: #{tpu_custom_call.1} parent=1 // loop_body
      %s27 = ssub.s32 %s22, 1
      %s28 = ssub.s32 %s22, 2
      %s29 = sadd.s32 %s22, 1
      %s30 = ssub.s32 %s22, %s29
      %p31 = scmp.eq.s32.totalorder %s30, 0
      %s33 = sadd.s32 %s32, 1
      %s34 = scalar_select %p31, %s32, %s33
      %p37 = pneg %p31
      %p38 = scmp.eq.s32.totalorder %s22, 1
      %p39 = por %p37, %p38
      %p40 = scmp.ne.s32.totalorder %s32, %s35
      %p41 = scmp.eq.s32.totalorder %s22, 0
      %p42 = por %p40, %p41
      %p43 = scmp.ne.s32.totalorder %s32, %s35
      %p44 = scmp.eq.s32.totalorder %s27, 1
      %p45 = por %p43, %p44
      %p46 = scmp.ne.s32.totalorder %s35, %s36
      %p47 = scmp.eq.s32.totalorder %s27, 0
      %p48 = por %p46, %p47
      %p49 = scmp.ne.s32.totalorder %s35, %s36
      %p50 = scmp.eq.s32.totalorder %s28, 1
      %p51 = por %p49, %p50
      %p53 = scmp.ne.s32.totalorder %s36, %s52
      %p54 = scmp.eq.s32.totalorder %s28, 0
      %p55 = por %p53, %p54
      %s57 = sadd.s32 %s56, 1
      %p60 = scmp.eq.s32.totalorder %s22, 1
      %p61 = scmp.ne.s32.totalorder %s56, %s58
      %p62 = scmp.eq.s32.totalorder %s22, 0
      %p63 = por %p61, %p62
      %p64 = scmp.ne.s32.totalorder %s56, %s58
      %p65 = scmp.eq.s32.totalorder %s27, 1
      %p66 = por %p64, %p65
      %p67 = scmp.ne.s32.totalorder %s58, %s59
      %p68 = scmp.eq.s32.totalorder %s27, 0
      %p69 = por %p67, %p68
      %p70 = scmp.ne.s32.totalorder %s58, %s59
      %p71 = scmp.eq.s32.totalorder %s28, 1
      %p72 = por %p70, %p71
      %p74 = scmp.ne.s32.totalorder %s59, %s73
      %p75 = scmp.eq.s32.totalorder %s28, 0
      %p76 = por %p74, %p75
      %s78 = sadd.s32 %s77, 1
      %p81 = scmp.eq.s32.totalorder %s22, 1
      %p82 = scmp.ne.s32.totalorder %s77, %s79
      %p83 = scmp.eq.s32.totalorder %s22, 0
      %p84 = por %p82, %p83
      %p85 = scmp.ne.s32.totalorder %s77, %s79
      %p86 = scmp.eq.s32.totalorder %s27, 1
      %p87 = por %p85, %p86
      %p88 = scmp.ne.s32.totalorder %s79, %s80
      %p89 = scmp.eq.s32.totalorder %s27, 0
      %p90 = por %p88, %p89
      %p91 = scmp.ne.s32.totalorder %s79, %s80
      %p92 = scmp.eq.s32.totalorder %s28, 1
      %p93 = por %p91, %p92
      %p95 = scmp.ne.s32.totalorder %s80, %s94
      %p96 = scmp.eq.s32.totalorder %s28, 0
      %p97 = por %p95, %p96
      %s99 = sadd.s32 %s98, 1
      %p102 = scmp.eq.s32.totalorder %s22, 1
      %p103 = scmp.ne.s32.totalorder %s98, %s100
      %p104 = scmp.eq.s32.totalorder %s22, 0
      %p105 = por %p103, %p104
      %p106 = scmp.ne.s32.totalorder %s98, %s100
      %p107 = scmp.eq.s32.totalorder %s27, 1
      %p108 = por %p106, %p107
      %p109 = scmp.ne.s32.totalorder %s100, %s101
      %p110 = scmp.eq.s32.totalorder %s27, 0
      %p111 = por %p109, %p110
      %p112 = scmp.ne.s32.totalorder %s100, %s101
      %p113 = scmp.eq.s32.totalorder %s28, 1
      %p114 = por %p112, %p113
      %p116 = scmp.ne.s32.totalorder %s101, %s115
      %p117 = scmp.eq.s32.totalorder %s28, 0
      %p118 = por %p116, %p117
      %s119 = ssub.s32 %s22, %s29
      %p120 = scmp.eq.s32.totalorder %s119, 0
      %s122 = sadd.s32 %s121, 1
      %s123 = scalar_select %p120, %s121, %s122
      %p126 = pneg %p120
      %p127 = scmp.eq.s32.totalorder %s22, 1
      %p128 = por %p126, %p127
      %p129 = scmp.ne.s32.totalorder %s121, %s124
      %p130 = scmp.eq.s32.totalorder %s22, 0
      %p131 = por %p129, %p130
      %p132 = scmp.ne.s32.totalorder %s121, %s124
      %p133 = scmp.eq.s32.totalorder %s27, 1
      %p134 = por %p132, %p133
      %p135 = scmp.ne.s32.totalorder %s124, %s125
      %p136 = scmp.eq.s32.totalorder %s27, 0
      %p137 = por %p135, %p136
      %p138 = scmp.ne.s32.totalorder %s124, %s125
      %p139 = scmp.eq.s32.totalorder %s28, 1
      %p140 = por %p138, %p139
      %p142 = scmp.ne.s32.totalorder %s125, %s141
      %p143 = scmp.eq.s32.totalorder %s28, 0
      %p144 = por %p142, %p143
      %s146 = sadd.s32 %s145, 1
      %p149 = scmp.eq.s32.totalorder %s22, 1
      %p150 = scmp.ne.s32.totalorder %s145, %s147
      %p151 = scmp.eq.s32.totalorder %s22, 0
      %p152 = por %p150, %p151
      %p153 = scmp.ne.s32.totalorder %s145, %s147
      %p154 = scmp.eq.s32.totalorder %s27, 1
      %p155 = por %p153, %p154
      %p156 = scmp.ne.s32.totalorder %s147, %s148
      %p157 = scmp.eq.s32.totalorder %s27, 0
      %p158 = por %p156, %p157
      %p159 = scmp.ne.s32.totalorder %s147, %s148
      %p160 = scmp.eq.s32.totalorder %s28, 1
      %p161 = por %p159, %p160
      %p163 = scmp.ne.s32.totalorder %s148, %s162
      %p164 = scmp.eq.s32.totalorder %s28, 0
      %p165 = por %p163, %p164
      %s167 = sadd.s32 %s166, 1
      %p170 = scmp.eq.s32.totalorder %s22, 1
      %p171 = scmp.ne.s32.totalorder %s166, %s168
      %p172 = scmp.eq.s32.totalorder %s22, 0
      %p173 = por %p171, %p172
      %p174 = scmp.ne.s32.totalorder %s166, %s168
      %p175 = scmp.eq.s32.totalorder %s27, 1
      %p176 = por %p174, %p175
      %p177 = scmp.ne.s32.totalorder %s168, %s169
      %p178 = scmp.eq.s32.totalorder %s27, 0
      %p179 = por %p177, %p178
      %p180 = scmp.ne.s32.totalorder %s168, %s169
      %p181 = scmp.eq.s32.totalorder %s28, 1
      %p182 = por %p180, %p181
      %p184 = scmp.ne.s32.totalorder %s169, %s183
      %p185 = scmp.eq.s32.totalorder %s28, 0
      %p186 = por %p184, %p185
      %p187 = scmp.le.s32.totalorder 1, %s22
      %p188 = scmp.lt.s32.totalorder %s22, 3
      %p189 = pnand %p187, %p188
      %p190 = pneg %p189
      // Predicated region
      $region9: #{tpu_custom_call.1} parent=5 // pred_check
        _
      $region10: #{tpu_custom_call.1} parent=5 // pred_check_branch
        %192 = sbr.rel (%p189) target = $region12
      $region11: #{tpu_custom_call.1} parent=5 // pred_region
        %s193 = ssub.s32 %s22, 1
        // Predicated region
        $region13: #{tpu_custom_call.1} parent=11 // pred_check
          %p194 = pneg %p69
        $region14: #{tpu_custom_call.1} parent=11 // pred_check_branch
          %196 = sbr.rel (%p194) target = $region16
        $region15: #{tpu_custom_call.1} parent=11 // pred_region
          %198 = vsyncadd [#allocation8], 0
          %s199 = sshll.u32 %s1, 4
          %s200 = int_to_ptr.hbm [resolvable:$true] %s199
          %s201 = sshll.u32 [#allocation7], 4
          %s202 = int_to_ptr.vmem [resolvable:$true] %s201
          %207 = dma.hbm_to_vmem [thread:$0]  %s200, 8192, %s202, [#allocation8], 512, 512, 32
        $region16: #{tpu_custom_call.1} parent=11 // pred_fallthru
          _
        // Predicated region
        $region17: #{tpu_custom_call.1} parent=11 // pred_check
          %p208 = pneg %p90
        $region18: #{tpu_custom_call.1} parent=11 // pred_check_branch
          %210 = sbr.rel (%p208) target = $region20
        $region19: #{tpu_custom_call.1} parent=11 // pred_region
          %212 = vsyncadd [#allocation8], 0
          %s214 = sshll.u32 %s2, 4
          %s215 = int_to_ptr.hbm [resolvable:$true] %s214
          %s216 = sshll.u32 [#allocation9], 4
          %s217 = int_to_ptr.vmem [resolvable:$true] %s216
          %219 = dma.hbm_to_vmem [thread:$0]  %s215, 128, %s217, [#allocation8]
        $region20: #{tpu_custom_call.1} parent=11 // pred_fallthru
          _
        // Predicated region
        $region21: #{tpu_custom_call.1} parent=11 // pred_check
          %p220 = pneg %p111
        $region22: #{tpu_custom_call.1} parent=11 // pred_check_branch
          %222 = sbr.rel (%p220) target = $region24
        $region23: #{tpu_custom_call.1} parent=11 // pred_region
          %224 = vsyncadd [#allocation11], 0
          %s226 = sshll.u32 %s3, 4
          %s227 = int_to_ptr.hbm [resolvable:$true] %s226
          %s228 = sshll.u32 [#allocation10], 4
          %s229 = int_to_ptr.vmem [resolvable:$true] %s228
          %231 = dma.hbm_to_vmem [thread:$0]  %s227, 128, %s229, [#allocation11]
        $region24: #{tpu_custom_call.1} parent=11 // pred_fallthru
          _
      $region12: #{tpu_custom_call.1} parent=5 // pred_fallthru
        _
      %p232 = scmp.lt.s32.totalorder %s22, 2
      // Predicated region
      $region25: #{tpu_custom_call.1} parent=5 // pred_check
        %p233 = pneg %p232
      $region26: #{tpu_custom_call.1} parent=5 // pred_check_branch
        %235 = sbr.rel (%p233) target = $region28
      $region27: #{tpu_custom_call.1} parent=5 // pred_region
        // Predicated region
        $region29: #{tpu_custom_call.1} parent=27 // pred_check
          %p236 = pneg %p42
        $region30: #{tpu_custom_call.1} parent=27 // pred_check_branch
          %238 = sbr.rel (%p236) target = $region32
        $region31: #{tpu_custom_call.1} parent=27 // pred_region
          %s239 = sand.u32 %s32, 1
          %s240 = scalar_lea.sflag [#allocation5], %s239
          %s241 = sand.u32 %s32, 1
          %s242 = smul.addr %s241, 128
          %s243 = scalar_lea.vmem [#allocation4], %s242
          %s244 = smul.u32 4, %s22
          %246 = vsyncadd %s240, 0
          %s247 = smul.addr %s244, 4
          %s248 = smul.addr %s247, 8
          %s249 = scalar_lea.hbm %s0, %s248
          %s250 = sshll.u32 %s249, 4
          %s251 = int_to_ptr.hbm [resolvable:$true] %s250
          %s252 = sshll.u32 %s243, 4
          %s253 = int_to_ptr.vmem [resolvable:$true] %s252
          %258 = dma.hbm_to_vmem [thread:$0]  %s251, 2048, %s253, %s240, 512, 512, 32
        $region32: #{tpu_custom_call.1} parent=27 // pred_fallthru
          _
      $region28: #{tpu_custom_call.1} parent=5 // pred_fallthru
        _
      %p259 = scmp.le.s32.totalorder 1, %s22
      %p260 = scmp.lt.s32.totalorder %s22, 3
      %p261 = pnand %p259, %p260
      %p262 = pneg %p261
      // Predicated region
      $region33: #{tpu_custom_call.1} parent=5 // pred_check
        _
      $region34: #{tpu_custom_call.1} parent=5 // pred_check_branch
        %264 = sbr.rel (%p261) target = $region36
      $region35: #{tpu_custom_call.1} parent=5 // pred_region
        %s265 = ssub.s32 %s22, 1
        %s266 = sand.u32 %s35, 1
        %s267 = scalar_lea.sflag [#allocation5], %s266
        %s268 = sand.u32 %s35, 1
        %s269 = smul.addr %s268, 128
        %s270 = scalar_lea.vmem [#allocation4], %s269
        // Predicated region
        $region37: #{tpu_custom_call.1} parent=35 // pred_check
          %p271 = pneg %p48
        $region38: #{tpu_custom_call.1} parent=35 // pred_check_branch
          %273 = sbr.rel (%p271) target = $region40
        $region39: #{tpu_custom_call.1} parent=35 // pred_region
          %275 = dma.done %s267, 2048
        $region40: #{tpu_custom_call.1} parent=35 // pred_fallthru
          _
        // Predicated region
        $region41: #{tpu_custom_call.1} parent=35 // pred_check
          %p276 = pneg %p69
        $region42: #{tpu_custom_call.1} parent=35 // pred_check_branch
          %278 = sbr.rel (%p276) target = $region44
        $region43: #{tpu_custom_call.1} parent=35 // pred_region
          %280 = dma.done [#allocation8], 8192
        $region44: #{tpu_custom_call.1} parent=35 // pred_fallthru
          _
        // Predicated region
        $region45: #{tpu_custom_call.1} parent=35 // pred_check
          %p281 = pneg %p90
        $region46: #{tpu_custom_call.1} parent=35 // pred_check_branch
          %283 = sbr.rel (%p281) target = $region48
        $region47: #{tpu_custom_call.1} parent=35 // pred_region
          %285 = dma.done [#allocation8], 128
        $region48: #{tpu_custom_call.1} parent=35 // pred_fallthru
          _
        // Predicated region
        $region49: #{tpu_custom_call.1} parent=35 // pred_check
          %p286 = pneg %p111
        $region50: #{tpu_custom_call.1} parent=35 // pred_check_branch
          %288 = sbr.rel (%p286) target = $region52
        $region51: #{tpu_custom_call.1} parent=35 // pred_region
          %290 = dma.done [#allocation11], 128
        $region52: #{tpu_custom_call.1} parent=35 // pred_fallthru
          _
        %s291 = sand.u32 %s35, 1
        %s292 = scalar_lea.sflag [#allocation5], %s291
        %s293 = sand.u32 %s35, 1
        %s294 = smul.addr %s293, 128
        %s295 = scalar_lea.vmem [#allocation4], %s294
        %p296 = pneg %p48
        %p297 = pneg %p45
        %p298 = pneg %p69
        %p299 = pneg %p66
        %p300 = pneg %p90
        %p301 = pneg %p87
        %p302 = pneg %p111
        %p303 = pneg %p108
        %p304 = pneg %p137
        %p305 = pneg %p134
        %s306 = sand.u32 %s124, 1
        %s307 = scalar_lea.sflag [#allocation6], %s306
        %s308 = sand.u32 %s124, 1
        %s309 = smul.addr %s308, 32
        %s310 = scalar_lea.vmem [#allocation12], %s309
        %p311 = pneg %p158
        %p312 = pneg %p155
        %p313 = pneg %p179
        %p314 = pneg %p176
        %s315 = smul.u32 4, %s27
        %s316 = smul.u32 4, %s27
        %p317 = scmp.eq.s32.totalorder %s27, 0
        // Predicated region
        $region53: #{tpu_custom_call.1} parent=35 // pred_check
          %p318 = pneg %p317
        $region54: #{tpu_custom_call.1} parent=35 // pred_check_branch
          %320 = sbr.rel (%p318) target = $region56
        $region55: #{tpu_custom_call.1} parent=35 // pred_region
          %v321 = vld [vmem:[#allocation9] sm:$0xff]
          %322 = vst [vmem:[#allocation2] sm:$0xff] %v321
          %v323 = vld [vmem:[#allocation10] sm:$0xff]
          %324 = vst [vmem:[#allocation3] sm:$0xff] %v323
        $region56: #{tpu_custom_call.1} parent=35 // pred_fallthru
          _
        %v325 = vld [vmem:[#allocation7] sm:$0xff]
        %v326 = vld [vmem:[#allocation7 + $0x8] sm:$0xff]
        %v327 = vld [vmem:[#allocation7 + $0x10] sm:$0xff]
        %v328 = vld [vmem:[#allocation7 + $0x18] sm:$0xff]
        %v329 = vld [vmem:[#allocation7 + $0x20] sm:$0xff]
        %v330 = vld [vmem:[#allocation7 + $0x28] sm:$0xff]
        %v331 = vld [vmem:[#allocation7 + $0x30] sm:$0xff]
        %v332 = vld [vmem:[#allocation7 + $0x38] sm:$0xff]
        %v333 = vld [vmem:[#allocation7 + $0x40] sm:$0xff]
        %v334 = vld [vmem:[#allocation7 + $0x48] sm:$0xff]
        %v335 = vld [vmem:[#allocation7 + $0x50] sm:$0xff]
        %v336 = vld [vmem:[#allocation7 + $0x58] sm:$0xff]
        %v337 = vld [vmem:[#allocation7 + $0x60] sm:$0xff]
        %v338 = vld [vmem:[#allocation7 + $0x68] sm:$0xff]
        %v339 = vld [vmem:[#allocation7 + $0x70] sm:$0xff]
        %v340 = vld [vmem:[#allocation7 + $0x78] sm:$0xff]
        %v341 = vld [vmem:[#allocation7 + $0x80] sm:$0xff]
        %v342 = vld [vmem:[#allocation7 + $0x88] sm:$0xff]
        %v343 = vld [vmem:[#allocation7 + $0x90] sm:$0xff]
        %v344 = vld [vmem:[#allocation7 + $0x98] sm:$0xff]
        %v345 = vld [vmem:[#allocation7 + $0xa0] sm:$0xff]
        %v346 = vld [vmem:[#allocation7 + $0xa8] sm:$0xff]
        %v347 = vld [vmem:[#allocation7 + $0xb0] sm:$0xff]
        %v348 = vld [vmem:[#allocation7 + $0xb8] sm:$0xff]
        %v349 = vld [vmem:[#allocation7 + $0xc0] sm:$0xff]
        %v350 = vld [vmem:[#allocation7 + $0xc8] sm:$0xff]
        %v351 = vld [vmem:[#allocation7 + $0xd0] sm:$0xff]
        %v352 = vld [vmem:[#allocation7 + $0xd8] sm:$0xff]
        %v353 = vld [vmem:[#allocation7 + $0xe0] sm:$0xff]
        %v354 = vld [vmem:[#allocation7 + $0xe8] sm:$0xff]
        %v355 = vld [vmem:[#allocation7 + $0xf0] sm:$0xff]
        %v356 = vld [vmem:[#allocation7 + $0xf8] sm:$0xff]
        %v357 = vld [vmem:[#allocation7 + $0x100] sm:$0xff]
        %v358 = vld [vmem:[#allocation7 + $0x108] sm:$0xff]
        %v359 = vld [vmem:[#allocation7 + $0x110] sm:$0xff]
        %v360 = vld [vmem:[#allocation7 + $0x118] sm:$0xff]
        %v361 = vld [vmem:[#allocation7 + $0x120] sm:$0xff]
        %v362 = vld [vmem:[#allocation7 + $0x128] sm:$0xff]
        %v363 = vld [vmem:[#allocation7 + $0x130] sm:$0xff]
        %v364 = vld [vmem:[#allocation7 + $0x138] sm:$0xff]
        %v365 = vld [vmem:[#allocation7 + $0x140] sm:$0xff]
        %v366 = vld [vmem:[#allocation7 + $0x148] sm:$0xff]
        %v367 = vld [vmem:[#allocation7 + $0x150] sm:$0xff]
        %v368 = vld [vmem:[#allocation7 + $0x158] sm:$0xff]
        %v369 = vld [vmem:[#allocation7 + $0x160] sm:$0xff]
        %v370 = vld [vmem:[#allocation7 + $0x168] sm:$0xff]
        %v371 = vld [vmem:[#allocation7 + $0x170] sm:$0xff]
        %v372 = vld [vmem:[#allocation7 + $0x178] sm:$0xff]
        %v373 = vld [vmem:[#allocation7 + $0x180] sm:$0xff]
        %v374 = vld [vmem:[#allocation7 + $0x188] sm:$0xff]
        %v375 = vld [vmem:[#allocation7 + $0x190] sm:$0xff]
        %v376 = vld [vmem:[#allocation7 + $0x198] sm:$0xff]
        %v377 = vld [vmem:[#allocation7 + $0x1a0] sm:$0xff]
        %v378 = vld [vmem:[#allocation7 + $0x1a8] sm:$0xff]
        %v379 = vld [vmem:[#allocation7 + $0x1b0] sm:$0xff]
        %v380 = vld [vmem:[#allocation7 + $0x1b8] sm:$0xff]
        %v381 = vld [vmem:[#allocation7 + $0x1c0] sm:$0xff]
        %v382 = vld [vmem:[#allocation7 + $0x1c8] sm:$0xff]
        %v383 = vld [vmem:[#allocation7 + $0x1d0] sm:$0xff]
        %v384 = vld [vmem:[#allocation7 + $0x1d8] sm:$0xff]
        %v385 = vld [vmem:[#allocation7 + $0x1e0] sm:$0xff]
        %v386 = vld [vmem:[#allocation7 + $0x1e8] sm:$0xff]
        %v387 = vld [vmem:[#allocation7 + $0x1f0] sm:$0xff]
        %v388 = vld [vmem:[#allocation7 + $0x1f8] sm:$0xff]
        %v389 = vld [vmem:[#allocation2] sm:$0xff]
        %v390 = vld [vmem:[#allocation3] sm:$0xff]
        %v391 = vld [vmem:[%s270] sm:$0xff]
        %v392 = vld [vmem:[%s270 + $0x8] sm:$0xff]
        %v393 = vld [vmem:[%s270 + $0x10] sm:$0xff]
        %v394 = vld [vmem:[%s270 + $0x18] sm:$0xff]
        %395 = vmatpush.msra.mxu0 %v385
        %396 = vmatpush.msra.mxu0 %v381
        %397 = vmatpush.msra.mxu0 %v377
        %398 = vmatpush.msra.mxu0 %v373
        %399 = vmatpush.msra.mxu0 %v369
        %400 = vmatpush.msra.mxu0 %v365
        %401 = vmatpush.msra.mxu0 %v361
        %402 = vmatpush.msra.mxu0 %v357
        %403 = vmatpush.msra.mxu0 %v353
        %404 = vmatpush.msra.mxu0 %v349
        %405 = vmatpush.msra.mxu0 %v345
        %406 = vmatpush.msra.mxu0 %v341
        %407 = vmatpush.msra.mxu0 %v337
        %408 = vmatpush.msra.mxu0 %v333
        %409 = vmatpush.msra.mxu0 %v329
        %410 = vmatpush.msra.mxu0 %v325
        %411 = vmatmul.f32.gmra.mxu0 %v389
        %v412 = vpop.f32.mrf.mxu0
        %v413 = vadd.f32 0.0, %v412
        %414 = vdwg.mxu0
        %415 = vmatpush.msra.mxu0 %v386
        %416 = vmatpush.msra.mxu0 %v382
        %417 = vmatpush.msra.mxu0 %v378
        %418 = vmatpush.msra.mxu0 %v374
        %419 = vmatpush.msra.mxu0 %v370
        %420 = vmatpush.msra.mxu0 %v366
        %421 = vmatpush.msra.mxu0 %v362
        %422 = vmatpush.msra.mxu0 %v358
        %423 = vmatpush.msra.mxu0 %v354
        %424 = vmatpush.msra.mxu0 %v350
        %425 = vmatpush.msra.mxu0 %v346
        %426 = vmatpush.msra.mxu0 %v342
        %427 = vmatpush.msra.mxu0 %v338
        %428 = vmatpush.msra.mxu0 %v334
        %429 = vmatpush.msra.mxu0 %v330
        %430 = vmatpush.msra.mxu0 %v326
        %431 = vmatmul.f32.gmra.mxu0 %v389
        %v432 = vpop.f32.mrf.mxu0
        %v433 = vadd.f32 0.0, %v432
        %434 = vdwg.mxu0
        %435 = vmatpush.msra.mxu0 %v387
        %436 = vmatpush.msra.mxu0 %v383
        %437 = vmatpush.msra.mxu0 %v379
        %438 = vmatpush.msra.mxu0 %v375
        %439 = vmatpush.msra.mxu0 %v371
        %440 = vmatpush.msra.mxu0 %v367
        %441 = vmatpush.msra.mxu0 %v363
        %442 = vmatpush.msra.mxu0 %v359
        %443 = vmatpush.msra.mxu0 %v355
        %444 = vmatpush.msra.mxu0 %v351
        %445 = vmatpush.msra.mxu0 %v347
        %446 = vmatpush.msra.mxu0 %v343
        %447 = vmatpush.msra.mxu0 %v339
        %448 = vmatpush.msra.mxu0 %v335
        %449 = vmatpush.msra.mxu0 %v331
        %450 = vmatpush.msra.mxu0 %v327
        %451 = vmatmul.f32.gmra.mxu0 %v389
        %v452 = vpop.f32.mrf.mxu0
        %v453 = vadd.f32 0.0, %v452
        %454 = vdwg.mxu0
        %455 = vmatpush.msra.mxu0 %v388
        %456 = vmatpush.msra.mxu0 %v384
        %457 = vmatpush.msra.mxu0 %v380
        %458 = vmatpush.msra.mxu0 %v376
        %459 = vmatpush.msra.mxu0 %v372
        %460 = vmatpush.msra.mxu0 %v368
        %461 = vmatpush.msra.mxu0 %v364
        %462 = vmatpush.msra.mxu0 %v360
        %463 = vmatpush.msra.mxu0 %v356
        %464 = vmatpush.msra.mxu0 %v352
        %465 = vmatpush.msra.mxu0 %v348
        %466 = vmatpush.msra.mxu0 %v344
        %467 = vmatpush.msra.mxu0 %v340
        %468 = vmatpush.msra.mxu0 %v336
        %469 = vmatpush.msra.mxu0 %v332
        %470 = vmatpush.msra.mxu0 %v328
        %471 = vmatmul.f32.gmra.mxu0 %v389
        %v472 = vpop.f32.mrf.mxu0
        %v473 = vadd.f32 0.0, %v472
        %474 = vdwg.mxu0
        %v475 = vadd.f32 %v391, %v413
        %v476 = vadd.f32 %v392, %v433
        %v477 = vadd.f32 %v393, %v453
        %v478 = vadd.f32 %v394, %v473
        %v479 = vxor.u32 %v475, 2147483648
        %v480 = vmul.f32 %v479, 1.442695
        %v481 = vpow.pop %v480
        %v482 = vadd.f32 %v481, 1.0
        %v483 = vrcp.pop %v482
        %v484 = vmul.f32 %v482, %v483
        %v485 = vsub.f32 1.0, %v484
        %v486 = vmul.f32 %v483, %v485
        %v487 = vadd.f32 %v483, %v486
        %vm488 = vweird.f32 %v482
        %vm489 = vweird.f32 %v483
        %vm490 = vmor %vm488, %vm489
        %v491 = vsel %vm490, %v483, %v487
        %v492 = vand.u32 2147483647, %v482
        %vm493 = vcmp.eq.f32.partialorder %v492, 8.507059e+37
        %v494 = vand.u32 %v482, 2147483648
        %v495 = vor.u32 1.1754944e-38, %v494
        %v496 = vsel %vm493, %v495, %v491
        %v497 = vmul.f32 1.0, %v496
        %v498 = vxor.u32 %v476, 2147483648
        %v499 = vmul.f32 %v498, 1.442695
        %v500 = vpow.pop %v499
        %v501 = vadd.f32 %v500, 1.0
        %v502 = vrcp.pop %v501
        %v503 = vmul.f32 %v501, %v502
        %v504 = vsub.f32 1.0, %v503
        %v505 = vmul.f32 %v502, %v504
        %v506 = vadd.f32 %v502, %v505
        %vm507 = vweird.f32 %v501
        %vm508 = vweird.f32 %v502
        %vm509 = vmor %vm507, %vm508
        %v510 = vsel %vm509, %v502, %v506
        %v511 = vand.u32 2147483647, %v501
        %vm512 = vcmp.eq.f32.partialorder %v511, 8.507059e+37
        %v513 = vand.u32 %v501, 2147483648
        %v514 = vor.u32 1.1754944e-38, %v513
        %v515 = vsel %vm512, %v514, %v510
        %v516 = vmul.f32 1.0, %v515
        %v517 = vtanh.pop %v477
        %v518 = vxor.u32 %v478, 2147483648
        %v519 = vmul.f32 %v518, 1.442695
        %v520 = vpow.pop %v519
        %v521 = vadd.f32 %v520, 1.0
        %v522 = vrcp.pop %v521
        %v523 = vmul.f32 %v521, %v522
        %v524 = vsub.f32 1.0, %v523
        %v525 = vmul.f32 %v522, %v524
        %v526 = vadd.f32 %v522, %v525
        %vm527 = vweird.f32 %v521
        %vm528 = vweird.f32 %v522
        %vm529 = vmor %vm527, %vm528
        %v530 = vsel %vm529, %v522, %v526
        %v531 = vand.u32 2147483647, %v521
        %vm532 = vcmp.eq.f32.partialorder %v531, 8.507059e+37
        %v533 = vand.u32 %v521, 2147483648
        %v534 = vor.u32 1.1754944e-38, %v533
        %v535 = vsel %vm532, %v534, %v530
        %v536 = vmul.f32 1.0, %v535
        %v537 = vmul.f32 %v516, %v390
        %v538 = vmul.f32 %v497, %v517
        %v539 = vadd.f32 %v537, %v538
        %v540 = vtanh.pop %v539
        %v541 = vmul.f32 %v536, %v540
        %542 = vst [vmem:[%s310] sm:$0xff] %v541
        %s543 = scalar_lea.vmem %s270, 32 [#allocation4]
        %v544 = vld [vmem:[%s543] sm:$0xff]
        %v545 = vld [vmem:[%s543 + $0x8] sm:$0xff]
        %v546 = vld [vmem:[%s543 + $0x10] sm:$0xff]
        %v547 = vld [vmem:[%s543 + $0x18] sm:$0xff]
        %548 = vmatpush.msra.mxu0 %v385
        %549 = vmatpush.msra.mxu0 %v381
        %550 = vmatpush.msra.mxu0 %v377
        %551 = vmatpush.msra.mxu0 %v373
        %552 = vmatpush.msra.mxu0 %v369
        %553 = vmatpush.msra.mxu0 %v365
        %554 = vmatpush.msra.mxu0 %v361
        %555 = vmatpush.msra.mxu0 %v357
        %556 = vmatpush.msra.mxu0 %v353
        %557 = vmatpush.msra.mxu0 %v349
        %558 = vmatpush.msra.mxu0 %v345
        %559 = vmatpush.msra.mxu0 %v341
        %560 = vmatpush.msra.mxu0 %v337
        %561 = vmatpush.msra.mxu0 %v333
        %562 = vmatpush.msra.mxu0 %v329
        %563 = vmatpush.msra.mxu0 %v325
        %564 = vmatmul.f32.gmra.mxu0 %v541
        %v565 = vpop.f32.mrf.mxu0
        %v566 = vadd.f32 0.0, %v565
        %567 = vdwg.mxu0
        %568 = vmatpush.msra.mxu0 %v386
        %569 = vmatpush.msra.mxu0 %v382
        %570 = vmatpush.msra.mxu0 %v378
        %571 = vmatpush.msra.mxu0 %v374
        %572 = vmatpush.msra.mxu0 %v370
        %573 = vmatpush.msra.mxu0 %v366
        %574 = vmatpush.msra.mxu0 %v362
        %575 = vmatpush.msra.mxu0 %v358
        %576 = vmatpush.msra.mxu0 %v354
        %577 = vmatpush.msra.mxu0 %v350
        %578 = vmatpush.msra.mxu0 %v346
        %579 = vmatpush.msra.mxu0 %v342
        %580 = vmatpush.msra.mxu0 %v338
        %581 = vmatpush.msra.mxu0 %v334
        %582 = vmatpush.msra.mxu0 %v330
        %583 = vmatpush.msra.mxu0 %v326
        %584 = vmatmul.f32.gmra.mxu0 %v541
        %v585 = vpop.f32.mrf.mxu0
        %v586 = vadd.f32 0.0, %v585
        %587 = vdwg.mxu0
        %588 = vmatpush.msra.mxu0 %v387
        %589 = vmatpush.msra.mxu0 %v383
        %590 = vmatpush.msra.mxu0 %v379
        %591 = vmatpush.msra.mxu0 %v375
        %592 = vmatpush.msra.mxu0 %v371
        %593 = vmatpush.msra.mxu0 %v367
        %594 = vmatpush.msra.mxu0 %v363
        %595 = vmatpush.msra.mxu0 %v359
        %596 = vmatpush.msra.mxu0 %v355
        %597 = vmatpush.msra.mxu0 %v351
        %598 = vmatpush.msra.mxu0 %v347
        %599 = vmatpush.msra.mxu0 %v343
        %600 = vmatpush.msra.mxu0 %v339
        %601 = vmatpush.msra.mxu0 %v335
        %602 = vmatpush.msra.mxu0 %v331
        %603 = vmatpush.msra.mxu0 %v327
        %604 = vmatmul.f32.gmra.mxu0 %v541
        %v605 = vpop.f32.mrf.mxu0
        %v606 = vadd.f32 0.0, %v605
        %607 = vdwg.mxu0
        %608 = vmatpush.msra.mxu0 %v388
        %609 = vmatpush.msra.mxu0 %v384
        %610 = vmatpush.msra.mxu0 %v380
        %611 = vmatpush.msra.mxu0 %v376
        %612 = vmatpush.msra.mxu0 %v372
        %613 = vmatpush.msra.mxu0 %v368
        %614 = vmatpush.msra.mxu0 %v364
        %615 = vmatpush.msra.mxu0 %v360
        %616 = vmatpush.msra.mxu0 %v356
        %617 = vmatpush.msra.mxu0 %v352
        %618 = vmatpush.msra.mxu0 %v348
        %619 = vmatpush.msra.mxu0 %v344
        %620 = vmatpush.msra.mxu0 %v340
        %621 = vmatpush.msra.mxu0 %v336
        %622 = vmatpush.msra.mxu0 %v332
        %623 = vmatpush.msra.mxu0 %v328
        %624 = vmatmul.f32.gmra.mxu0 %v541
        %v625 = vpop.f32.mrf.mxu0
        %v626 = vadd.f32 0.0, %v625
        %627 = vdwg.mxu0
        %v628 = vadd.f32 %v544, %v566
        %v629 = vadd.f32 %v545, %v586
        %v630 = vadd.f32 %v546, %v606
        %v631 = vadd.f32 %v547, %v626
        %v632 = vxor.u32 %v628, 2147483648
        %v633 = vmul.f32 %v632, 1.442695
        %v634 = vpow.pop %v633
        %v635 = vadd.f32 %v634, 1.0
        %v636 = vrcp.pop %v635
        %v637 = vmul.f32 %v635, %v636
        %v638 = vsub.f32 1.0, %v637
        %v639 = vmul.f32 %v636, %v638
        %v640 = vadd.f32 %v636, %v639
        %vm641 = vweird.f32 %v635
        %vm642 = vweird.f32 %v636
        %vm643 = vmor %vm641, %vm642
        %v644 = vsel %vm643, %v636, %v640
        %v645 = vand.u32 2147483647, %v635
        %vm646 = vcmp.eq.f32.partialorder %v645, 8.507059e+37
        %v647 = vand.u32 %v635, 2147483648
        %v648 = vor.u32 1.1754944e-38, %v647
        %v649 = vsel %vm646, %v648, %v644
        %v650 = vmul.f32 1.0, %v649
        %v651 = vxor.u32 %v629, 2147483648
        %v652 = vmul.f32 %v651, 1.442695
        %v653 = vpow.pop %v652
        %v654 = vadd.f32 %v653, 1.0
        %v655 = vrcp.pop %v654
        %v656 = vmul.f32 %v654, %v655
        %v657 = vsub.f32 1.0, %v656
        %v658 = vmul.f32 %v655, %v657
        %v659 = vadd.f32 %v655, %v658
        %vm660 = vweird.f32 %v654
        %vm661 = vweird.f32 %v655
        %vm662 = vmor %vm660, %vm661
        %v663 = vsel %vm662, %v655, %v659
        %v664 = vand.u32 2147483647, %v654
        %vm665 = vcmp.eq.f32.partialorder %v664, 8.507059e+37
        %v666 = vand.u32 %v654, 2147483648
        %v667 = vor.u32 1.1754944e-38, %v666
        %v668 = vsel %vm665, %v667, %v663
        %v669 = vmul.f32 1.0, %v668
        %v670 = vtanh.pop %v630
        %v671 = vxor.u32 %v631, 2147483648
        %v672 = vmul.f32 %v671, 1.442695
        %v673 = vpow.pop %v672
        %v674 = vadd.f32 %v673, 1.0
        %v675 = vrcp.pop %v674
        %v676 = vmul.f32 %v674, %v675
        %v677 = vsub.f32 1.0, %v676
        %v678 = vmul.f32 %v675, %v677
        %v679 = vadd.f32 %v675, %v678
        %vm680 = vweird.f32 %v674
        %vm681 = vweird.f32 %v675
        %vm682 = vmor %vm680, %vm681
        %v683 = vsel %vm682, %v675, %v679
        %v684 = vand.u32 2147483647, %v674
        %vm685 = vcmp.eq.f32.partialorder %v684, 8.507059e+37
        %v686 = vand.u32 %v674, 2147483648
        %v687 = vor.u32 1.1754944e-38, %v686
        %v688 = vsel %vm685, %v687, %v683
        %v689 = vmul.f32 1.0, %v688
        %v690 = vmul.f32 %v669, %v539
        %v691 = vmul.f32 %v650, %v670
        %v692 = vadd.f32 %v690, %v691
        %v693 = vtanh.pop %v692
        %v694 = vmul.f32 %v689, %v693
        %s695 = scalar_lea.vmem %s310, 8 [#allocation12]
        %696 = vst [vmem:[%s695] sm:$0xff] %v694
        %s697 = scalar_lea.vmem %s270, 64 [#allocation4]
        %v698 = vld [vmem:[%s697] sm:$0xff]
        %v699 = vld [vmem:[%s697 + $0x8] sm:$0xff]
        %v700 = vld [vmem:[%s697 + $0x10] sm:$0xff]
        %v701 = vld [vmem:[%s697 + $0x18] sm:$0xff]
        %702 = vmatpush.msra.mxu0 %v385
        %703 = vmatpush.msra.mxu0 %v381
        %704 = vmatpush.msra.mxu0 %v377
        %705 = vmatpush.msra.mxu0 %v373
        %706 = vmatpush.msra.mxu0 %v369
        %707 = vmatpush.msra.mxu0 %v365
        %708 = vmatpush.msra.mxu0 %v361
        %709 = vmatpush.msra.mxu0 %v357
        %710 = vmatpush.msra.mxu0 %v353
        %711 = vmatpush.msra.mxu0 %v349
        %712 = vmatpush.msra.mxu0 %v345
        %713 = vmatpush.msra.mxu0 %v341
        %714 = vmatpush.msra.mxu0 %v337
        %715 = vmatpush.msra.mxu0 %v333
        %716 = vmatpush.msra.mxu0 %v329
        %717 = vmatpush.msra.mxu0 %v325
        %718 = vmatmul.f32.gmra.mxu0 %v694
        %v719 = vpop.f32.mrf.mxu0
        %v720 = vadd.f32 0.0, %v719
        %721 = vdwg.mxu0
        %722 = vmatpush.msra.mxu0 %v386
        %723 = vmatpush.msra.mxu0 %v382
        %724 = vmatpush.msra.mxu0 %v378
        %725 = vmatpush.msra.mxu0 %v374
        %726 = vmatpush.msra.mxu0 %v370
        %727 = vmatpush.msra.mxu0 %v366
        %728 = vmatpush.msra.mxu0 %v362
        %729 = vmatpush.msra.mxu0 %v358
        %730 = vmatpush.msra.mxu0 %v354
        %731 = vmatpush.msra.mxu0 %v350
        %732 = vmatpush.msra.mxu0 %v346
        %733 = vmatpush.msra.mxu0 %v342
        %734 = vmatpush.msra.mxu0 %v338
        %735 = vmatpush.msra.mxu0 %v334
        %736 = vmatpush.msra.mxu0 %v330
        %737 = vmatpush.msra.mxu0 %v326
        %738 = vmatmul.f32.gmra.mxu0 %v694
        %v739 = vpop.f32.mrf.mxu0
        %v740 = vadd.f32 0.0, %v739
        %741 = vdwg.mxu0
        %742 = vmatpush.msra.mxu0 %v387
        %743 = vmatpush.msra.mxu0 %v383
        %744 = vmatpush.msra.mxu0 %v379
        %745 = vmatpush.msra.mxu0 %v375
        %746 = vmatpush.msra.mxu0 %v371
        %747 = vmatpush.msra.mxu0 %v367
        %748 = vmatpush.msra.mxu0 %v363
        %749 = vmatpush.msra.mxu0 %v359
        %750 = vmatpush.msra.mxu0 %v355
        %751 = vmatpush.msra.mxu0 %v351
        %752 = vmatpush.msra.mxu0 %v347
        %753 = vmatpush.msra.mxu0 %v343
        %754 = vmatpush.msra.mxu0 %v339
        %755 = vmatpush.msra.mxu0 %v335
        %756 = vmatpush.msra.mxu0 %v331
        %757 = vmatpush.msra.mxu0 %v327
        %758 = vmatmul.f32.gmra.mxu0 %v694
        %v759 = vpop.f32.mrf.mxu0
        %v760 = vadd.f32 0.0, %v759
        %761 = vdwg.mxu0
        %762 = vmatpush.msra.mxu0 %v388
        %763 = vmatpush.msra.mxu0 %v384
        %764 = vmatpush.msra.mxu0 %v380
        %765 = vmatpush.msra.mxu0 %v376
        %766 = vmatpush.msra.mxu0 %v372
        %767 = vmatpush.msra.mxu0 %v368
        %768 = vmatpush.msra.mxu0 %v364
        %769 = vmatpush.msra.mxu0 %v360
        %770 = vmatpush.msra.mxu0 %v356
        %771 = vmatpush.msra.mxu0 %v352
        %772 = vmatpush.msra.mxu0 %v348
        %773 = vmatpush.msra.mxu0 %v344
        %774 = vmatpush.msra.mxu0 %v340
        %775 = vmatpush.msra.mxu0 %v336
        %776 = vmatpush.msra.mxu0 %v332
        %777 = vmatpush.msra.mxu0 %v328
        %778 = vmatmul.f32.gmra.mxu0 %v694
        %v779 = vpop.f32.mrf.mxu0
        %v780 = vadd.f32 0.0, %v779
        %781 = vdwg.mxu0
        %v782 = vadd.f32 %v698, %v720
        %v783 = vadd.f32 %v699, %v740
        %v784 = vadd.f32 %v700, %v760
        %v785 = vadd.f32 %v701, %v780
        %v786 = vxor.u32 %v782, 2147483648
        %v787 = vmul.f32 %v786, 1.442695
        %v788 = vpow.pop %v787
        %v789 = vadd.f32 %v788, 1.0
        %v790 = vrcp.pop %v789
        %v791 = vmul.f32 %v789, %v790
        %v792 = vsub.f32 1.0, %v791
        %v793 = vmul.f32 %v790, %v792
        %v794 = vadd.f32 %v790, %v793
        %vm795 = vweird.f32 %v789
        %vm796 = vweird.f32 %v790
        %vm797 = vmor %vm795, %vm796
        %v798 = vsel %vm797, %v790, %v794
        %v799 = vand.u32 2147483647, %v789
        %vm800 = vcmp.eq.f32.partialorder %v799, 8.507059e+37
        %v801 = vand.u32 %v789, 2147483648
        %v802 = vor.u32 1.1754944e-38, %v801
        %v803 = vsel %vm800, %v802, %v798
        %v804 = vmul.f32 1.0, %v803
        %v805 = vxor.u32 %v783, 2147483648
        %v806 = vmul.f32 %v805, 1.442695
        %v807 = vpow.pop %v806
        %v808 = vadd.f32 %v807, 1.0
        %v809 = vrcp.pop %v808
        %v810 = vmul.f32 %v808, %v809
        %v811 = vsub.f32 1.0, %v810
        %v812 = vmul.f32 %v809, %v811
        %v813 = vadd.f32 %v809, %v812
        %vm814 = vweird.f32 %v808
        %vm815 = vweird.f32 %v809
        %vm816 = vmor %vm814, %vm815
        %v817 = vsel %vm816, %v809, %v813
        %v818 = vand.u32 2147483647, %v808
        %vm819 = vcmp.eq.f32.partialorder %v818, 8.507059e+37
        %v820 = vand.u32 %v808, 2147483648
        %v821 = vor.u32 1.1754944e-38, %v820
        %v822 = vsel %vm819, %v821, %v817
        %v823 = vmul.f32 1.0, %v822
        %v824 = vtanh.pop %v784
        %v825 = vxor.u32 %v785, 2147483648
        %v826 = vmul.f32 %v825, 1.442695
        %v827 = vpow.pop %v826
        %v828 = vadd.f32 %v827, 1.0
        %v829 = vrcp.pop %v828
        %v830 = vmul.f32 %v828, %v829
        %v831 = vsub.f32 1.0, %v830
        %v832 = vmul.f32 %v829, %v831
        %v833 = vadd.f32 %v829, %v832
        %vm834 = vweird.f32 %v828
        %vm835 = vweird.f32 %v829
        %vm836 = vmor %vm834, %vm835
        %v837 = vsel %vm836, %v829, %v833
        %v838 = vand.u32 2147483647, %v828
        %vm839 = vcmp.eq.f32.partialorder %v838, 8.507059e+37
        %v840 = vand.u32 %v828, 2147483648
        %v841 = vor.u32 1.1754944e-38, %v840
        %v842 = vsel %vm839, %v841, %v837
        %v843 = vmul.f32 1.0, %v842
        %v844 = vmul.f32 %v823, %v692
        %v845 = vmul.f32 %v804, %v824
        %v846 = vadd.f32 %v844, %v845
        %v847 = vtanh.pop %v846
        %v848 = vmul.f32 %v843, %v847
        %s849 = scalar_lea.vmem %s310, 16 [#allocation12]
        %850 = vst [vmem:[%s849] sm:$0xff] %v848
        %s851 = scalar_lea.vmem %s270, 96 [#allocation4]
        %v852 = vld [vmem:[%s851] sm:$0xff]
        %v853 = vld [vmem:[%s851 + $0x8] sm:$0xff]
        %v854 = vld [vmem:[%s851 + $0x10] sm:$0xff]
        %v855 = vld [vmem:[%s851 + $0x18] sm:$0xff]
        %856 = vmatpush.msra.mxu0 %v385
        %857 = vmatpush.msra.mxu0 %v381
        %858 = vmatpush.msra.mxu0 %v377
        %859 = vmatpush.msra.mxu0 %v373
        %860 = vmatpush.msra.mxu0 %v369
        %861 = vmatpush.msra.mxu0 %v365
        %862 = vmatpush.msra.mxu0 %v361
        %863 = vmatpush.msra.mxu0 %v357
        %864 = vmatpush.msra.mxu0 %v353
        %865 = vmatpush.msra.mxu0 %v349
        %866 = vmatpush.msra.mxu0 %v345
        %867 = vmatpush.msra.mxu0 %v341
        %868 = vmatpush.msra.mxu0 %v337
        %869 = vmatpush.msra.mxu0 %v333
        %870 = vmatpush.msra.mxu0 %v329
        %871 = vmatpush.msra.mxu0 %v325
        %872 = vmatmul.f32.gmra.mxu0 %v848
        %v873 = vpop.f32.mrf.mxu0
        %v874 = vadd.f32 0.0, %v873
        %875 = vdwg.mxu0
        %876 = vmatpush.msra.mxu0 %v386
        %877 = vmatpush.msra.mxu0 %v382
        %878 = vmatpush.msra.mxu0 %v378
        %879 = vmatpush.msra.mxu0 %v374
        %880 = vmatpush.msra.mxu0 %v370
        %881 = vmatpush.msra.mxu0 %v366
        %882 = vmatpush.msra.mxu0 %v362
        %883 = vmatpush.msra.mxu0 %v358
        %884 = vmatpush.msra.mxu0 %v354
        %885 = vmatpush.msra.mxu0 %v350
        %886 = vmatpush.msra.mxu0 %v346
        %887 = vmatpush.msra.mxu0 %v342
        %888 = vmatpush.msra.mxu0 %v338
        %889 = vmatpush.msra.mxu0 %v334
        %890 = vmatpush.msra.mxu0 %v330
        %891 = vmatpush.msra.mxu0 %v326
        %892 = vmatmul.f32.gmra.mxu0 %v848
        %v893 = vpop.f32.mrf.mxu0
        %v894 = vadd.f32 0.0, %v893
        %895 = vdwg.mxu0
        %896 = vmatpush.msra.mxu0 %v387
        %897 = vmatpush.msra.mxu0 %v383
        %898 = vmatpush.msra.mxu0 %v379
        %899 = vmatpush.msra.mxu0 %v375
        %900 = vmatpush.msra.mxu0 %v371
        %901 = vmatpush.msra.mxu0 %v367
        %902 = vmatpush.msra.mxu0 %v363
        %903 = vmatpush.msra.mxu0 %v359
        %904 = vmatpush.msra.mxu0 %v355
        %905 = vmatpush.msra.mxu0 %v351
        %906 = vmatpush.msra.mxu0 %v347
        %907 = vmatpush.msra.mxu0 %v343
        %908 = vmatpush.msra.mxu0 %v339
        %909 = vmatpush.msra.mxu0 %v335
        %910 = vmatpush.msra.mxu0 %v331
        %911 = vmatpush.msra.mxu0 %v327
        %912 = vmatmul.f32.gmra.mxu0 %v848
        %v913 = vpop.f32.mrf.mxu0
        %v914 = vadd.f32 0.0, %v913
        %915 = vdwg.mxu0
        %916 = vmatpush.msra.mxu0 %v388
        %917 = vmatpush.msra.mxu0 %v384
        %918 = vmatpush.msra.mxu0 %v380
        %919 = vmatpush.msra.mxu0 %v376
        %920 = vmatpush.msra.mxu0 %v372
        %921 = vmatpush.msra.mxu0 %v368
        %922 = vmatpush.msra.mxu0 %v364
        %923 = vmatpush.msra.mxu0 %v360
        %924 = vmatpush.msra.mxu0 %v356
        %925 = vmatpush.msra.mxu0 %v352
        %926 = vmatpush.msra.mxu0 %v348
        %927 = vmatpush.msra.mxu0 %v344
        %928 = vmatpush.msra.mxu0 %v340
        %929 = vmatpush.msra.mxu0 %v336
        %930 = vmatpush.msra.mxu0 %v332
        %931 = vmatpush.msra.mxu0 %v328
        %932 = vmatmul.f32.gmra.mxu0 %v848
        %v933 = vpop.f32.mrf.mxu0
        %v934 = vadd.f32 0.0, %v933
        %935 = vdwg.mxu0
        %v936 = vadd.f32 %v852, %v874
        %v937 = vadd.f32 %v853, %v894
        %v938 = vadd.f32 %v854, %v914
        %v939 = vadd.f32 %v855, %v934
        %v940 = vxor.u32 %v936, 2147483648
        %v941 = vmul.f32 %v940, 1.442695
        %v942 = vpow.pop %v941
        %v943 = vadd.f32 %v942, 1.0
        %v944 = vrcp.pop %v943
        %v945 = vmul.f32 %v943, %v944
        %v946 = vsub.f32 1.0, %v945
        %v947 = vmul.f32 %v944, %v946
        %v948 = vadd.f32 %v944, %v947
        %vm949 = vweird.f32 %v943
        %vm950 = vweird.f32 %v944
        %vm951 = vmor %vm949, %vm950
        %v952 = vsel %vm951, %v944, %v948
        %v953 = vand.u32 2147483647, %v943
        %vm954 = vcmp.eq.f32.partialorder %v953, 8.507059e+37
        %v955 = vand.u32 %v943, 2147483648
        %v956 = vor.u32 1.1754944e-38, %v955
        %v957 = vsel %vm954, %v956, %v952
        %v958 = vmul.f32 1.0, %v957
        %v959 = vxor.u32 %v937, 2147483648
        %v960 = vmul.f32 %v959, 1.442695
        %v961 = vpow.pop %v960
        %v962 = vadd.f32 %v961, 1.0
        %v963 = vrcp.pop %v962
        %v964 = vmul.f32 %v962, %v963
        %v965 = vsub.f32 1.0, %v964
        %v966 = vmul.f32 %v963, %v965
        %v967 = vadd.f32 %v963, %v966
        %vm968 = vweird.f32 %v962
        %vm969 = vweird.f32 %v963
        %vm970 = vmor %vm968, %vm969
        %v971 = vsel %vm970, %v963, %v967
        %v972 = vand.u32 2147483647, %v962
        %vm973 = vcmp.eq.f32.partialorder %v972, 8.507059e+37
        %v974 = vand.u32 %v962, 2147483648
        %v975 = vor.u32 1.1754944e-38, %v974
        %v976 = vsel %vm973, %v975, %v971
        %v977 = vmul.f32 1.0, %v976
        %v978 = vtanh.pop %v938
        %v979 = vxor.u32 %v939, 2147483648
        %v980 = vmul.f32 %v979, 1.442695
        %v981 = vpow.pop %v980
        %v982 = vadd.f32 %v981, 1.0
        %v983 = vrcp.pop %v982
        %v984 = vmul.f32 %v982, %v983
        %v985 = vsub.f32 1.0, %v984
        %v986 = vmul.f32 %v983, %v985
        %v987 = vadd.f32 %v983, %v986
        %vm988 = vweird.f32 %v982
        %vm989 = vweird.f32 %v983
        %vm990 = vmor %vm988, %vm989
        %v991 = vsel %vm990, %v983, %v987
        %v992 = vand.u32 2147483647, %v982
        %vm993 = vcmp.eq.f32.partialorder %v992, 8.507059e+37
        %v994 = vand.u32 %v982, 2147483648
        %v995 = vor.u32 1.1754944e-38, %v994
        %v996 = vsel %vm993, %v995, %v991
        %v997 = vmul.f32 1.0, %v996
        %v998 = vmul.f32 %v977, %v846
        %v999 = vmul.f32 %v958, %v978
        %v1000 = vadd.f32 %v998, %v999
        %v1001 = vtanh.pop %v1000
        %v1002 = vmul.f32 %v997, %v1001
        %s1003 = scalar_lea.vmem %s310, 24 [#allocation12]
        %1004 = vst [vmem:[%s1003] sm:$0xff] %v1002
        %1005 = vst [vmem:[#allocation2] sm:$0xff] %v1002
        %1006 = vst [vmem:[#allocation3] sm:$0xff] %v1000
        %p1007 = scmp.eq.s32.totalorder %s27, 1
        // Predicated region
        $region57: #{tpu_custom_call.1} parent=35 // pred_check
          %p1008 = pneg %p1007
        $region58: #{tpu_custom_call.1} parent=35 // pred_check_branch
          %1010 = sbr.rel (%p1008) target = $region60
        $region59: #{tpu_custom_call.1} parent=35 // pred_region
          %1011 = vst [vmem:[#allocation13] sm:$0xff] %v1002
          %1012 = vst [vmem:[#allocation15] sm:$0xff] %v1000
        $region60: #{tpu_custom_call.1} parent=35 // pred_fallthru
          _
        %s1013 = sand.u32 %s124, 1
        %s1014 = scalar_lea.sflag [#allocation6], %s1013
        %s1015 = sand.u32 %s124, 1
        %s1016 = smul.addr %s1015, 32
        %s1017 = scalar_lea.vmem [#allocation12], %s1016
        // Predicated region
        $region61: #{tpu_custom_call.1} parent=35 // pred_check
          %p1018 = pneg %p134
        $region62: #{tpu_custom_call.1} parent=35 // pred_check_branch
          %1020 = sbr.rel (%p1018) target = $region64
        $region63: #{tpu_custom_call.1} parent=35 // pred_region
          %s1021 = smul.u32 4, %s27
          %1023 = vsyncadd %s1014, 0
          %s1024 = smul.addr %s1021, 8
          %s1025 = scalar_lea.hbm %s4, %s1024
          %s1026 = sshll.u32 %s1017, 4
          %s1027 = int_to_ptr.vmem [resolvable:$true] %s1026
          %s1028 = sshll.u32 %s1025, 4
          %s1029 = int_to_ptr.hbm [resolvable:$true] %s1028
          %1034 = dma.vmem_to_hbm [thread:$0]  %s1027, 512, %s1029, %s1014, 128, 128, 8
        $region64: #{tpu_custom_call.1} parent=35 // pred_fallthru
          _
        // Predicated region
        $region65: #{tpu_custom_call.1} parent=35 // pred_check
          %p1035 = pneg %p155
        $region66: #{tpu_custom_call.1} parent=35 // pred_check_branch
          %1037 = sbr.rel (%p1035) target = $region68
        $region67: #{tpu_custom_call.1} parent=35 // pred_region
          %1039 = vsyncadd [#allocation14], 0
          %s1041 = sshll.u32 [#allocation13], 4
          %s1042 = int_to_ptr.vmem [resolvable:$true] %s1041
          %s1043 = sshll.u32 %s5, 4
          %s1044 = int_to_ptr.hbm [resolvable:$true] %s1043
          %1046 = dma.vmem_to_hbm [thread:$0]  %s1042, 128, %s1044, [#allocation14]
        $region68: #{tpu_custom_call.1} parent=35 // pred_fallthru
          _
        // Predicated region
        $region69: #{tpu_custom_call.1} parent=35 // pred_check
          %p1047 = pneg %p176
        $region70: #{tpu_custom_call.1} parent=35 // pred_check_branch
          %1049 = sbr.rel (%p1047) target = $region72
        $region71: #{tpu_custom_call.1} parent=35 // pred_region
          %1051 = vsyncadd [#allocation14], 0
          %s1053 = sshll.u32 [#allocation15], 4
          %s1054 = int_to_ptr.vmem [resolvable:$true] %s1053
          %s1055 = sshll.u32 %s6, 4
          %s1056 = int_to_ptr.hbm [resolvable:$true] %s1055
          %1058 = dma.vmem_to_hbm [thread:$0]  %s1054, 128, %s1056, [#allocation14]
        $region72: #{tpu_custom_call.1} parent=35 // pred_fallthru
          _
        // Predicated region
        $region73: #{tpu_custom_call.1} parent=35 // pred_check
          %p1059 = pneg %p155
        $region74: #{tpu_custom_call.1} parent=35 // pred_check_branch
          %1061 = sbr.rel (%p1059) target = $region76
        $region75: #{tpu_custom_call.1} parent=35 // pred_region
          %1063 = dma.done [#allocation14], 128
        $region76: #{tpu_custom_call.1} parent=35 // pred_fallthru
          _
        // Predicated region
        $region77: #{tpu_custom_call.1} parent=35 // pred_check
          %p1064 = pneg %p176
        $region78: #{tpu_custom_call.1} parent=35 // pred_check_branch
          %1066 = sbr.rel (%p1064) target = $region80
        $region79: #{tpu_custom_call.1} parent=35 // pred_region
          %1068 = dma.done [#allocation14], 128
        $region80: #{tpu_custom_call.1} parent=35 // pred_fallthru
          _
      $region36: #{tpu_custom_call.1} parent=5 // pred_fallthru
        _
      %p1069 = scmp.le.s32.totalorder 2, %s22
      // Predicated region
      $region81: #{tpu_custom_call.1} parent=5 // pred_check
        %p1070 = pneg %p1069
      $region82: #{tpu_custom_call.1} parent=5 // pred_check_branch
        %1072 = sbr.rel (%p1070) target = $region84
      $region83: #{tpu_custom_call.1} parent=5 // pred_region
        %s1073 = ssub.s32 %s22, 2
        // Predicated region
        $region85: #{tpu_custom_call.1} parent=83 // pred_check
          %p1074 = pneg %p140
        $region86: #{tpu_custom_call.1} parent=83 // pred_check_branch
          %1076 = sbr.rel (%p1074) target = $region88
        $region87: #{tpu_custom_call.1} parent=83 // pred_region
          %s1077 = sand.u32 %s125, 1
          %s1078 = scalar_lea.sflag [#allocation6], %s1077
          %s1079 = sand.u32 %s125, 1
          %s1080 = smul.addr %s1079, 32
          %s1081 = scalar_lea.vmem [#allocation12], %s1080
          %1083 = dma.done %s1078, 512
        $region88: #{tpu_custom_call.1} parent=83 // pred_fallthru
          _
      $region84: #{tpu_custom_call.1} parent=5 // pred_fallthru
        _
    $region6: #{tpu_custom_call.1} parent=1 // loop_footer
      %s26 = sadd.s32 1, %s22
    $region7: #{tpu_custom_call.1} parent=1 // loop_footer_branch
      %21 = sbr.rel target = $region3
    $region8: #{tpu_custom_call.1} parent=1 // loop_exit
      _
    %1084 = vsyncpa [#allocation5], 1
    %s1085 = scalar_lea.sflag [#allocation5], 1
    %1086 = vsyncpa %s1085, 1
    %1087 = vsyncpa [#allocation8], 1
    %1088 = vsyncpa [#allocation11], 1
    %1089 = vsyncpa [#allocation6], 1
    %s1090 = scalar_lea.sflag [#allocation6], 1
    %1091 = vsyncpa %s1090, 1
    %1092 = vsyncpa [#allocation14], 1

</llo_original>
